<compile_context>
chip_gen: v7x
topology: tpu7x:2x2x1
jax: 0.10.0
libtpu: 0.0.40
codegen_flags: <defaults>
</compile_context>

<pallas_src>
import jax
import jax.numpy as jnp
from jax.experimental import pallas as pl
from jax.experimental.pallas import tpu as pltpu


def preprocess_kernel(r_ref, m_ref, p_ref, a_ref,
                      wr_ref, wm_ref, wp_ref, wa_ref,
                      c_ref, out_ref):
    """Sum of four partial dots (block-diagonal fused GEMM) + additive const.

    r_ref:   (T, Dr)      rewards
    m_ref:   (T, Dm)      maps
    p_ref:   (T, 4*Dp)    paths
    a_ref:   (T, Da)      actions
    w*_ref:  (D*, 4H)     modality weight, nonzero only in its own H-wide
                          column block (k*H:(k+1)*H)
    c_ref:   (T, 4H)      precomputed biases + timestep embeddings
    out_ref: (T, 4H)      lane-dense interleaved output
    """
    acc = jnp.dot(r_ref[...], wr_ref[...], preferred_element_type=jnp.float32)
    acc += jnp.dot(m_ref[...], wm_ref[...], preferred_element_type=jnp.float32)
    acc += jnp.dot(p_ref[...], wp_ref[...], preferred_element_type=jnp.float32)
    acc += jnp.dot(a_ref[...], wa_ref[...], preferred_element_type=jnp.float32)
    out_ref[...] = acc + c_ref[...]


def init_params(key, context_window, hidden_dim, reward_dim, map_dim,
                path_dim, action_dim):
    """Deterministic synthetic parameters + fused/precomputed tensors."""
    T = context_window
    H = hidden_dim
    dims = (reward_dim, map_dim, 4 * path_dim, action_dim)

    ks = jax.random.split(key, 9)

    def linear(kw, kb, fan_in):
        bound = 1.0 / jnp.sqrt(fan_in)
        w = jax.random.uniform(kw, (fan_in, H), jnp.float32, -bound, bound)
        b = jax.random.uniform(kb, (H,), jnp.float32, -bound, bound)
        return w, b

    w_r, b_r = linear(ks[0], ks[1], reward_dim)
    w_m, b_m = linear(ks[2], ks[3], map_dim)
    w_p, b_p = linear(ks[4], ks[5], 4 * path_dim)
    w_a, b_a = linear(ks[6], ks[7], action_dim)
    # nn.Embedding(context_window, hidden_dim), default N(0, 1) init
    ts_table = jax.random.normal(ks[8], (T, H), jnp.float32)

    # --- column-padded per-modality weights: (D_k, 4H), block k nonzero ------
    def col_pad(w, k):
        out = jnp.zeros((w.shape[0], 4 * H), jnp.float32)
        return out.at[:, k * H:(k + 1) * H].set(w)

    w_r_blk = col_pad(w_r, 0)
    w_m_blk = col_pad(w_m, 1)
    w_p_blk = col_pad(w_p, 2)
    w_a_blk = col_pad(w_a, 3)

    # --- precomputed additive constant (T, 4H) -------------------------------
    # Flat position q = 4*i + k receives timestep_table[q % T]
    # (torch: arange(T).unsqueeze(0).repeat(1, 4).flatten() == tile semantics).
    idx = (4 * jnp.arange(T, dtype=jnp.int32)[:, None]
           + jnp.arange(4, dtype=jnp.int32)[None, :]) % T          # (T, 4)
    ts = ts_table[idx]                                              # (T, 4, H)
    biases = jnp.stack((b_r, b_m, b_p, b_a), axis=0)                # (4, H)
    add_const = (ts + biases[None, :, :]).reshape(T, 4 * H)         # (T, 4H)

    return dict(w_r=w_r, b_r=b_r, w_m=w_m, b_m=b_m, w_p=w_p, b_p=b_p,
                w_a=w_a, b_a=b_a, timestep_table=ts_table,
                w_r_blk=w_r_blk, w_m_blk=w_m_blk, w_p_blk=w_p_blk,
                w_a_blk=w_a_blk, add_const=add_const)


@jax.jit
def preprocess_forward(params, rewards, maps, paths, actions):
    T = rewards.shape[0]                    # == context_window (ctor arg)
    add_const = params["add_const"]
    fourH = add_const.shape[1]
    H = fourH // 4

    vmem = pl.BlockSpec(memory_space=pltpu.MemorySpace.VMEM)
    out = pl.pallas_call(
        preprocess_kernel,
        out_shape=jax.ShapeDtypeStruct((T, fourH), jnp.float32),
        in_specs=[vmem] * 9,
        out_specs=vmem,
    )(rewards, maps, paths, actions,
      params["w_r_blk"], params["w_m_blk"],
      params["w_p_blk"], params["w_a_blk"],
      add_const)

    # Row-major (T, 4H) -> (4T, H) == PyTorch's strided interleave (free).
    return out.reshape(4 * T, H)


def preprocess_reference(params, rewards, maps, paths, actions):
    """Pure-JAX reference mirroring the PyTorch forward exactly."""
    T = rewards.shape[0]
    H = params["w_r"].shape[1]
    cw4 = 4 * T
    r = rewards @ params["w_r"] + params["b_r"]
    m = maps @ params["w_m"] + params["b_m"]
    p = paths @ params["w_p"] + params["b_p"]
    a = actions @ params["w_a"] + params["b_a"]
    embeds = jnp.zeros((cw4, H), jnp.float32)
    embeds = embeds.at[0:4 * T:4].set(r)
    embeds = embeds.at[1:4 * T:4].set(m)
    embeds = embeds.at[2:4 * T:4].set(p)
    embeds = embeds.at[3:4 * T:4].set(a)
    timesteps = jnp.tile(jnp.arange(T), 4)          # repeat(1,4).flatten()
    embeds = embeds + params["timestep_table"][timesteps]
    return embeds


if __name__ == "__main__":
    # Module hyper-parameters (small, consistent with the forward pass).
    context_window = 8      # -> self.context_window = 32 output tokens
    hidden_dim = 32
    n_heads = 2             # unused in forward, kept for fidelity
    reward_dim = 4
    map_dim = 16
    path_dim = 3            # path input feature dim is 4 * path_dim = 12
    action_dim = 6

    key = jax.random.PRNGKey(0)
    kp, kr, km, kpt, ka = jax.random.split(key, 5)

    params = init_params(kp, context_window, hidden_dim, reward_dim,
                         map_dim, path_dim, action_dim)

    rewards = jax.random.normal(kr, (context_window, reward_dim), jnp.float32)
    maps = jax.random.normal(km, (context_window, map_dim), jnp.float32)
    paths = jax.random.normal(kpt, (context_window, 4 * path_dim), jnp.float32)
    actions = jax.random.normal(ka, (context_window, action_dim), jnp.float32)

    out = preprocess_forward(params, rewards, maps, paths, actions)
    out = jax.block_until_ready(out)

    ref = preprocess_reference(params, rewards, maps, paths, actions)
    assert out.shape == (4 * context_window, hidden_dim)
    assert jnp.allclose(out, ref, atol=1e-5, rtol=1e-5), "mismatch vs reference"

    print("KERNEL_OK")
</pallas_src>

<mosaic_0001>
module attributes {stable_mosaic.version = 11 : i64} {
  func.func @preprocess_kernel(%arg0: memref<8x4xf32, #tpu.memory_space<vmem>>, %arg1: memref<8x16xf32, #tpu.memory_space<vmem>>, %arg2: memref<8x12xf32, #tpu.memory_space<vmem>>, %arg3: memref<8x6xf32, #tpu.memory_space<vmem>>, %arg4: memref<4x128xf32, #tpu.memory_space<vmem>>, %arg5: memref<16x128xf32, #tpu.memory_space<vmem>>, %arg6: memref<12x128xf32, #tpu.memory_space<vmem>>, %arg7: memref<6x128xf32, #tpu.memory_space<vmem>>, %arg8: memref<8x128xf32, #tpu.memory_space<vmem>>, %arg9: memref<8x128xf32, #tpu.memory_space<vmem>>) attributes {dimension_semantics = [], scalar_prefetch = 0 : i64, scratch_operands = 0 : i64, tpu.core_type = #tpu.core_type<tc>} {
    %c0 = arith.constant 0 : index
    %c0_0 = arith.constant 0 : index
    %0 = vector.load %arg0[%c0, %c0_0] : memref<8x4xf32, #tpu.memory_space<vmem>>, vector<8x4xf32>
    %c0_1 = arith.constant 0 : index
    %c0_2 = arith.constant 0 : index
    %1 = vector.load %arg4[%c0_1, %c0_2] : memref<4x128xf32, #tpu.memory_space<vmem>>, vector<4x128xf32>
    %cst = arith.constant dense<0.000000e+00> : vector<8x128xf32>
    %2 = tpu.matmul %0, %1, %cst {dimension_numbers = #tpu.dot_dimension_numbers<[1], [0], [0], [1], [0, 0, 1, 1], [], []>} : vector<8x4xf32>, vector<4x128xf32>, vector<8x128xf32> -> vector<8x128xf32>
    %c0_3 = arith.constant 0 : index
    %c0_4 = arith.constant 0 : index
    %3 = vector.load %arg1[%c0_3, %c0_4] : memref<8x16xf32, #tpu.memory_space<vmem>>, vector<8x16xf32>
    %c0_5 = arith.constant 0 : index
    %c0_6 = arith.constant 0 : index
    %4 = vector.load %arg5[%c0_5, %c0_6] : memref<16x128xf32, #tpu.memory_space<vmem>>, vector<16x128xf32>
    %cst_7 = arith.constant dense<0.000000e+00> : vector<8x128xf32>
    %5 = tpu.matmul %3, %4, %cst_7 {dimension_numbers = #tpu.dot_dimension_numbers<[1], [0], [0], [1], [0, 0, 1, 1], [], []>} : vector<8x16xf32>, vector<16x128xf32>, vector<8x128xf32> -> vector<8x128xf32>
    %6 = arith.addf %2, %5 : vector<8x128xf32>
    %c0_8 = arith.constant 0 : index
    %c0_9 = arith.constant 0 : index
    %7 = vector.load %arg2[%c0_8, %c0_9] : memref<8x12xf32, #tpu.memory_space<vmem>>, vector<8x12xf32>
    %c0_10 = arith.constant 0 : index
    %c0_11 = arith.constant 0 : index
    %8 = vector.load %arg6[%c0_10, %c0_11] : memref<12x128xf32, #tpu.memory_space<vmem>>, vector<12x128xf32>
    %cst_12 = arith.constant dense<0.000000e+00> : vector<8x128xf32>
    %9 = tpu.matmul %7, %8, %cst_12 {dimension_numbers = #tpu.dot_dimension_numbers<[1], [0], [0], [1], [0, 0, 1, 1], [], []>} : vector<8x12xf32>, vector<12x128xf32>, vector<8x128xf32> -> vector<8x128xf32>
    %10 = arith.addf %6, %9 : vector<8x128xf32>
    %c0_13 = arith.constant 0 : index
    %c0_14 = arith.constant 0 : index
    %11 = vector.load %arg3[%c0_13, %c0_14] : memref<8x6xf32, #tpu.memory_space<vmem>>, vector<8x6xf32>
    %c0_15 = arith.constant 0 : index
    %c0_16 = arith.constant 0 : index
    %12 = vector.load %arg7[%c0_15, %c0_16] : memref<6x128xf32, #tpu.memory_space<vmem>>, vector<6x128xf32>
    %cst_17 = arith.constant dense<0.000000e+00> : vector<8x128xf32>
    %13 = tpu.matmul %11, %12, %cst_17 {dimension_numbers = #tpu.dot_dimension_numbers<[1], [0], [0], [1], [0, 0, 1, 1], [], []>} : vector<8x6xf32>, vector<6x128xf32>, vector<8x128xf32> -> vector<8x128xf32>
    %14 = arith.addf %10, %13 : vector<8x128xf32>
    %c0_18 = arith.constant 0 : index
    %c0_19 = arith.constant 0 : index
    %15 = vector.load %arg8[%c0_18, %c0_19] : memref<8x128xf32, #tpu.memory_space<vmem>>, vector<8x128xf32>
    %16 = arith.addf %14, %15 : vector<8x128xf32>
    %c0_20 = arith.constant 0 : index
    %c0_21 = arith.constant 0 : index
    %17 = vector.load %arg9[%c0_20, %c0_21] : memref<8x128xf32, #tpu.memory_space<vmem>>, vector<8x128xf32>
    tpu.vector_store %arg9[%c0_20, %c0_21], %16 {strides = array<i32>} : memref<8x128xf32, #tpu.memory_space<vmem>>, vector<8x128xf32>,
    return
  }
}

</mosaic_0001>

<llo_original>
// kernel: preprocess_forward.1
$region0: #{preprocess_forward.1}
  #allocation0 [shape = 'u32[]', space=smem, size = 0x4, offset = 0x4, fixed_abs, tag = 'smem constant byte address 0x4 - core index']
  #allocation1 [shape = 'u32[144,128]{1,0:T(1,128)}', space=vmem, size = 0x12000, scoped, tag = 'internal scratch']
  %s0 = inlined_call_operand.vmem [shape: f32[8,4], index: 0, kind: input, shape index: {}]
  %s1 = inlined_call_operand.vmem [shape: f32[8,16], index: 1, kind: input, shape index: {}]
  %s2 = inlined_call_operand.vmem [shape: f32[8,12], index: 2, kind: input, shape index: {}]
  %s3 = inlined_call_operand.vmem [shape: f32[8,6], index: 3, kind: input, shape index: {}]
  %s4 = inlined_call_operand.hbm [shape: f32[4,128], index: 4, kind: input, shape index: {}]
  %s5 = inlined_call_operand.vmem [shape: f32[16,128], index: 5, kind: input, shape index: {}]
  %s6 = inlined_call_operand.hbm [shape: f32[12,128], index: 6, kind: input, shape index: {}]
  %s7 = inlined_call_operand.hbm [shape: f32[6,128], index: 7, kind: input, shape index: {}]
  %s8 = inlined_call_operand.hbm [shape: f32[8,128], index: 8, kind: input, shape index: {}]
  %s9 = inlined_call_operand.vmem [shape: f32[8,128], index: 9, kind: output, shape index: {}]
  %s10 = sld [smem:[#allocation0]]
  $region62: #{preprocess_forward.1} parent=0
    _
  %s12 = ssub.s32 1, %s10
  %s13 = scalar_select 0, %s12, %s10
  $region1: #{preprocess_forward.1} parent=0
    #allocation2 [shape = 'u8[2048]{0}', space=vmem, size = 0x800, scoped, tag = 'input window, operand 4, single buffered']
    #allocation3 [shape = 's32[1]{0}', space=sflag, size = 0x4, scoped, tag = 'scoped memory for preprocess_forward.1']
    #allocation4 [shape = 'u8[8192]{0}', space=vmem, size = 0x2000, scoped, tag = 'input window, operand 6, single buffered']
    #allocation5 [shape = 's32[1]{0}', space=sflag, size = 0x4, scoped, tag = 'scoped memory for preprocess_forward.1']
    #allocation6 [shape = 'u8[4096]{0}', space=vmem, size = 0x1000, scoped, tag = 'input window, operand 7, single buffered']
    #allocation7 [shape = 'u8[4096]{0}', space=vmem, size = 0x1000, scoped, tag = 'input window, operand 8, single buffered']
    #allocation8 [shape = 's32[1]{0}', space=sflag, size = 0x4, scoped, tag = 'scoped memory for preprocess_forward.1']
    %14 = vsyncpa [#allocation3], 0
    %15 = vsyncpa [#allocation5], 0
    %16 = vsyncpa [#allocation8], 0
    // Predicated region
    $region2: #{preprocess_forward.1} parent=1 // pred_check
      _
    $region3: #{preprocess_forward.1} parent=1 // pred_check_branch
      %18 = sbr.rel (0) target = $region5
    $region4: #{preprocess_forward.1} parent=1 // pred_region
      _
    $region5: #{preprocess_forward.1} parent=1 // pred_fallthru
      _
    // Predicated region
    $region6: #{preprocess_forward.1} parent=1 // pred_check
      _
    $region7: #{preprocess_forward.1} parent=1 // pred_check_branch
      %20 = sbr.rel (0) target = $region9
    $region8: #{preprocess_forward.1} parent=1 // pred_region
      _
    $region9: #{preprocess_forward.1} parent=1 // pred_fallthru
      _
    // Predicated region
    $region10: #{preprocess_forward.1} parent=1 // pred_check
      _
    $region11: #{preprocess_forward.1} parent=1 // pred_check_branch
      %22 = sbr.rel (0) target = $region13
    $region12: #{preprocess_forward.1} parent=1 // pred_region
      _
    $region13: #{preprocess_forward.1} parent=1 // pred_fallthru
      _
    // Predicated region
    $region14: #{preprocess_forward.1} parent=1 // pred_check
      _
    $region15: #{preprocess_forward.1} parent=1 // pred_check_branch
      %24 = sbr.rel (0) target = $region17
    $region16: #{preprocess_forward.1} parent=1 // pred_region
      _
    $region17: #{preprocess_forward.1} parent=1 // pred_fallthru
      _
    // Predicated region
    $region18: #{preprocess_forward.1} parent=1 // pred_check
      _
    $region19: #{preprocess_forward.1} parent=1 // pred_check_branch
      %26 = sbr.rel (0) target = $region21
    $region20: #{preprocess_forward.1} parent=1 // pred_region
      %s28 = ssub.s32 64, 64
      %29 = vsyncadd [#allocation3], %s28
      %s31 = sshll.u32 [#allocation2], 4
      %s32 = int_to_ptr.vmem [resolvable:$true] %s31
      %34 = dma.hbm_to_vmem [thread:$0]  %s4, 64, %s32, [#allocation3]
    $region21: #{preprocess_forward.1} parent=1 // pred_fallthru
      _
    // Predicated region
    $region22: #{preprocess_forward.1} parent=1 // pred_check
      _
    $region23: #{preprocess_forward.1} parent=1 // pred_check_branch
      %36 = sbr.rel (0) target = $region25
    $region24: #{preprocess_forward.1} parent=1 // pred_region
      _
    $region25: #{preprocess_forward.1} parent=1 // pred_fallthru
      _
    // Predicated region
    $region26: #{preprocess_forward.1} parent=1 // pred_check
      _
    $region27: #{preprocess_forward.1} parent=1 // pred_check_branch
      %38 = sbr.rel (0) target = $region29
    $region28: #{preprocess_forward.1} parent=1 // pred_region
      %s40 = ssub.s32 256, 256
      %41 = vsyncadd [#allocation5], %s40
      %s42 = sshll.u32 [#allocation4], 4
      %s43 = int_to_ptr.vmem [resolvable:$true] %s42
      %48 = dma.hbm_to_vmem [thread:$0]  %s6, 256, %s43, [#allocation5], 128, 128, 8
    $region29: #{preprocess_forward.1} parent=1 // pred_fallthru
      _
    // Predicated region
    $region30: #{preprocess_forward.1} parent=1 // pred_check
      _
    $region31: #{preprocess_forward.1} parent=1 // pred_check_branch
      %50 = sbr.rel (0) target = $region33
    $region32: #{preprocess_forward.1} parent=1 // pred_region
      %s52 = ssub.s32 128, 128
      %53 = vsyncadd [#allocation5], %s52
      %s55 = sshll.u32 [#allocation6], 4
      %s56 = int_to_ptr.vmem [resolvable:$true] %s55
      %58 = dma.hbm_to_vmem [thread:$0]  %s7, 128, %s56, [#allocation5]
    $region33: #{preprocess_forward.1} parent=1 // pred_fallthru
      _
    // Predicated region
    $region34: #{preprocess_forward.1} parent=1 // pred_check
      _
    $region35: #{preprocess_forward.1} parent=1 // pred_check_branch
      %60 = sbr.rel (0) target = $region37
    $region36: #{preprocess_forward.1} parent=1 // pred_region
      %s62 = ssub.s32 128, 128
      %63 = vsyncadd [#allocation8], %s62
      %s65 = sshll.u32 [#allocation7], 4
      %s66 = int_to_ptr.vmem [resolvable:$true] %s65
      %68 = dma.hbm_to_vmem [thread:$0]  %s8, 128, %s66, [#allocation8]
    $region37: #{preprocess_forward.1} parent=1 // pred_fallthru
      _
    // Predicated region
    $region38: #{preprocess_forward.1} parent=1 // pred_check
      _
    $region39: #{preprocess_forward.1} parent=1 // pred_check_branch
      %70 = sbr.rel (0) target = $region41
    $region40: #{preprocess_forward.1} parent=1 // pred_region
      %71 = dma.done [#allocation3], 64
    $region41: #{preprocess_forward.1} parent=1 // pred_fallthru
      _
    // Predicated region
    $region42: #{preprocess_forward.1} parent=1 // pred_check
      _
    $region43: #{preprocess_forward.1} parent=1 // pred_check_branch
      %73 = sbr.rel (0) target = $region45
    $region44: #{preprocess_forward.1} parent=1 // pred_region
      %74 = dma.done [#allocation5], 256
    $region45: #{preprocess_forward.1} parent=1 // pred_fallthru
      _
    // Predicated region
    $region46: #{preprocess_forward.1} parent=1 // pred_check
      _
    $region47: #{preprocess_forward.1} parent=1 // pred_check_branch
      %76 = sbr.rel (0) target = $region49
    $region48: #{preprocess_forward.1} parent=1 // pred_region
      %77 = dma.done [#allocation5], 128
    $region49: #{preprocess_forward.1} parent=1 // pred_fallthru
      _
    // Predicated region
    $region50: #{preprocess_forward.1} parent=1 // pred_check
      _
    $region51: #{preprocess_forward.1} parent=1 // pred_check_branch
      %79 = sbr.rel (0) target = $region53
    $region52: #{preprocess_forward.1} parent=1 // pred_region
      %80 = dma.done [#allocation8], 128
    $region53: #{preprocess_forward.1} parent=1 // pred_fallthru
      _
    %v81 = vld [vmem:[%s0] sm:$0xff]
    %v82 = vld [vmem:[#allocation2] sm:$0xf]
    %v83 = vld [vmem:[%s1] sm:$0xff]
    %v84 = vld [vmem:[%s5] sm:$0xff]
    %v85 = vld [vmem:[%s5 + $0x8] sm:$0xff]
    %vm86 = vcmask 130048
    %v88 = vsel %vm86, %v83, 0
    %90 = vmatprep.subr.mxu0 0.0
    %91 = vmatpush1.msra.mxu0 %v84
    %92 = vmatprep.subr.mxu0 0.0
    %93 = vmatpush1.msra.mxu0 %v85
    %94 = vmatprep.subr.mxu0 0.0
    %95 = vmatpush1.msra.mxu0 0.0
    %96 = vmatprep.subr.mxu0 0.0
    %97 = vmatpush1.msra.mxu0 0.0
    %98 = vmatprep.subr.mxu0 0.0
    %99 = vmatpush1.msra.mxu0 0.0
    %100 = vmatprep.subr.mxu0 0.0
    %101 = vmatpush1.msra.mxu0 0.0
    %102 = vmatprep.subr.mxu0 0.0
    %103 = vmatpush1.msra.mxu0 0.0
    %104 = vmatprep.subr.mxu0 0.0
    %105 = vmatpush1.msra.mxu0 0.0
    %106 = vmatprep.subr.mxu0 0.0
    %107 = vmatpush1.msra.mxu0 0.0
    %108 = vmatprep.subr.mxu0 0.0
    %109 = vmatpush1.msra.mxu0 0.0
    %110 = vmatprep.subr.mxu0 0.0
    %111 = vmatpush1.msra.mxu0 0.0
    %112 = vmatprep.subr.mxu0 0.0
    %113 = vmatpush1.msra.mxu0 0.0
    %114 = vmatprep.subr.mxu0 0.0
    %115 = vmatpush1.msra.mxu0 0.0
    %116 = vmatprep.subr.mxu0 0.0
    %117 = vmatpush1.msra.mxu0 0.0
    %118 = vmatprep.subr.mxu0 0.0
    %119 = vmatpush1.msra.mxu0 0.0
    %120 = vmatprep.subr.mxu0 0.0
    %121 = vmatpush1.msra.mxu0 0.0
    %122 = vmatprep.subr.mxu0 0.0
    %123 = vmatpush1.msra.mxu0 0.0
    %124 = vmatprep.subr.mxu0 0.0
    %125 = vmatpush1.msra.mxu0 0.0
    %126 = vmatprep.subr.mxu0 0.0
    %127 = vmatpush1.msra.mxu0 0.0
    %128 = vmatprep.subr.mxu0 0.0
    %129 = vmatpush1.msra.mxu0 0.0
    %130 = vmatprep.subr.mxu0 0.0
    %131 = vmatpush1.msra.mxu0 0.0
    %132 = vmatprep.subr.mxu0 0.0
    %133 = vmatpush1.msra.mxu0 0.0
    %134 = vmatprep.subr.mxu0 0.0
    %135 = vmatpush1.msra.mxu0 0.0
    %136 = vmatprep.subr.mxu0 0.0
    %137 = vmatpush1.msra.mxu0 0.0
    %138 = vmatprep.subr.mxu0 0.0
    %139 = vmatpush1.msra.mxu0 0.0
    %140 = vmatprep.subr.mxu0 0.0
    %141 = vmatpush1.msra.mxu0 0.0
    %142 = vmatprep.subr.mxu0 0.0
    %143 = vmatpush1.msra.mxu0 0.0
    %144 = vmatprep.subr.mxu0 0.0
    %145 = vmatpush1.msra.mxu0 0.0
    %146 = vmatprep.subr.mxu0 0.0
    %147 = vmatpush1.msra.mxu0 0.0
    %148 = vmatprep.subr.mxu0 0.0
    %149 = vmatpush1.msra.mxu0 0.0
    %150 = vmatprep.subr.mxu0 0.0
    %151 = vmatpush1.msra.mxu0 0.0
    %152 = vmatprep.subr.mxu0 0.0
    %153 = vmatpush1.msra.mxu0 0.0
    %154 = vmatprep.mubr.f32.mxu0 0.0
    %155 = vmatmul.mubr.f32.gmra.mrb[0].mxu0 %v88
    %v156 = vpop.f32.mrb[0].mxu0
    %v157 = vadd.f32 0.0, %v156
    %v158 = vpop.f32.mrb[0].mxu0
    %159 = vdwg.mxu0
    %vm160 = vcmask 31744
    %v162 = vsel %vm160, %v81, 0
    %vm164 = vcmask 1043456
    %v166 = vsel %vm164, %v82, 0
    %168 = vmatprep.subr.mxu0 0.0
    %169 = vmatpush1.msra.mxu0 %v166
    %170 = vmatprep.subr.mxu0 0.0
    %171 = vmatpush1.msra.mxu0 0.0
    %172 = vmatprep.subr.mxu0 0.0
    %173 = vmatpush1.msra.mxu0 0.0
    %174 = vmatprep.subr.mxu0 0.0
    %175 = vmatpush1.msra.mxu0 0.0
    %176 = vmatprep.subr.mxu0 0.0
    %177 = vmatpush1.msra.mxu0 0.0
    %178 = vmatprep.subr.mxu0 0.0
    %179 = vmatpush1.msra.mxu0 0.0
    %180 = vmatprep.subr.mxu0 0.0
    %181 = vmatpush1.msra.mxu0 0.0
    %182 = vmatprep.subr.mxu0 0.0
    %183 = vmatpush1.msra.mxu0 0.0
    %184 = vmatprep.subr.mxu0 0.0
    %185 = vmatpush1.msra.mxu0 0.0
    %186 = vmatprep.subr.mxu0 0.0
    %187 = vmatpush1.msra.mxu0 0.0
    %188 = vmatprep.subr.mxu0 0.0
    %189 = vmatpush1.msra.mxu0 0.0
    %190 = vmatprep.subr.mxu0 0.0
    %191 = vmatpush1.msra.mxu0 0.0
    %192 = vmatprep.subr.mxu0 0.0
    %193 = vmatpush1.msra.mxu0 0.0
    %194 = vmatprep.subr.mxu0 0.0
    %195 = vmatpush1.msra.mxu0 0.0
    %196 = vmatprep.subr.mxu0 0.0
    %197 = vmatpush1.msra.mxu0 0.0
    %198 = vmatprep.subr.mxu0 0.0
    %199 = vmatpush1.msra.mxu0 0.0
    %200 = vmatprep.subr.mxu0 0.0
    %201 = vmatpush1.msra.mxu0 0.0
    %202 = vmatprep.subr.mxu0 0.0
    %203 = vmatpush1.msra.mxu0 0.0
    %204 = vmatprep.subr.mxu0 0.0
    %205 = vmatpush1.msra.mxu0 0.0
    %206 = vmatprep.subr.mxu0 0.0
    %207 = vmatpush1.msra.mxu0 0.0
    %208 = vmatprep.subr.mxu0 0.0
    %209 = vmatpush1.msra.mxu0 0.0
    %210 = vmatprep.subr.mxu0 0.0
    %211 = vmatpush1.msra.mxu0 0.0
    %212 = vmatprep.subr.mxu0 0.0
    %213 = vmatpush1.msra.mxu0 0.0
    %214 = vmatprep.subr.mxu0 0.0
    %215 = vmatpush1.msra.mxu0 0.0
    %216 = vmatprep.subr.mxu0 0.0
    %217 = vmatpush1.msra.mxu0 0.0
    %218 = vmatprep.subr.mxu0 0.0
    %219 = vmatpush1.msra.mxu0 0.0
    %220 = vmatprep.subr.mxu0 0.0
    %221 = vmatpush1.msra.mxu0 0.0
    %222 = vmatprep.subr.mxu0 0.0
    %223 = vmatpush1.msra.mxu0 0.0
    %224 = vmatprep.subr.mxu0 0.0
    %225 = vmatpush1.msra.mxu0 0.0
    %226 = vmatprep.subr.mxu0 0.0
    %227 = vmatpush1.msra.mxu0 0.0
    %228 = vmatprep.subr.mxu0 0.0
    %229 = vmatpush1.msra.mxu0 0.0
    %230 = vmatprep.subr.mxu0 0.0
    %231 = vmatpush1.msra.mxu0 0.0
    %232 = vmatprep.mubr.f32.mxu0 0.0
    %233 = vmatmul.mubr.f32.gmra.mrb[0].mxu0 %v162
    %v234 = vpop.f32.mrb[0].mxu0
    %v235 = vadd.f32 %v157, %v234
    %v236 = vpop.f32.mrb[0].mxu0
    %237 = vdwg.mxu0
    %v238 = vld [vmem:[%s2] sm:$0xff]
    %v239 = vld [vmem:[#allocation4] sm:$0xff]
    %v240 = vld [vmem:[#allocation4 + $0x8] sm:$0xf]
    %vm241 = vcmask 97280
    %v243 = vsel %vm241, %v238, 0
    %v246 = vsel %vm164, %v240, 0
    %248 = vmatprep.subr.mxu0 0.0
    %249 = vmatpush1.msra.mxu0 %v239
    %250 = vmatprep.subr.mxu0 0.0
    %251 = vmatpush1.msra.mxu0 %v246
    %252 = vmatprep.subr.mxu0 0.0
    %253 = vmatpush1.msra.mxu0 0.0
    %254 = vmatprep.subr.mxu0 0.0
    %255 = vmatpush1.msra.mxu0 0.0
    %256 = vmatprep.subr.mxu0 0.0
    %257 = vmatpush1.msra.mxu0 0.0
    %258 = vmatprep.subr.mxu0 0.0
    %259 = vmatpush1.msra.mxu0 0.0
    %260 = vmatprep.subr.mxu0 0.0
    %261 = vmatpush1.msra.mxu0 0.0
    %262 = vmatprep.subr.mxu0 0.0
    %263 = vmatpush1.msra.mxu0 0.0
    %264 = vmatprep.subr.mxu0 0.0
    %265 = vmatpush1.msra.mxu0 0.0
    %266 = vmatprep.subr.mxu0 0.0
    %267 = vmatpush1.msra.mxu0 0.0
    %268 = vmatprep.subr.mxu0 0.0
    %269 = vmatpush1.msra.mxu0 0.0
    %270 = vmatprep.subr.mxu0 0.0
    %271 = vmatpush1.msra.mxu0 0.0
    %272 = vmatprep.subr.mxu0 0.0
    %273 = vmatpush1.msra.mxu0 0.0
    %274 = vmatprep.subr.mxu0 0.0
    %275 = vmatpush1.msra.mxu0 0.0
    %276 = vmatprep.subr.mxu0 0.0
    %277 = vmatpush1.msra.mxu0 0.0
    %278 = vmatprep.subr.mxu0 0.0
    %279 = vmatpush1.msra.mxu0 0.0
    %280 = vmatprep.subr.mxu0 0.0
    %281 = vmatpush1.msra.mxu0 0.0
    %282 = vmatprep.subr.mxu0 0.0
    %283 = vmatpush1.msra.mxu0 0.0
    %284 = vmatprep.subr.mxu0 0.0
    %285 = vmatpush1.msra.mxu0 0.0
    %286 = vmatprep.subr.mxu0 0.0
    %287 = vmatpush1.msra.mxu0 0.0
    %288 = vmatprep.subr.mxu0 0.0
    %289 = vmatpush1.msra.mxu0 0.0
    %290 = vmatprep.subr.mxu0 0.0
    %291 = vmatpush1.msra.mxu0 0.0
    %292 = vmatprep.subr.mxu0 0.0
    %293 = vmatpush1.msra.mxu0 0.0
    %294 = vmatprep.subr.mxu0 0.0
    %295 = vmatpush1.msra.mxu0 0.0
    %296 = vmatprep.subr.mxu0 0.0
    %297 = vmatpush1.msra.mxu0 0.0
    %298 = vmatprep.subr.mxu0 0.0
    %299 = vmatpush1.msra.mxu0 0.0
    %300 = vmatprep.subr.mxu0 0.0
    %301 = vmatpush1.msra.mxu0 0.0
    %302 = vmatprep.subr.mxu0 0.0
    %303 = vmatpush1.msra.mxu0 0.0
    %304 = vmatprep.subr.mxu0 0.0
    %305 = vmatpush1.msra.mxu0 0.0
    %306 = vmatprep.subr.mxu0 0.0
    %307 = vmatpush1.msra.mxu0 0.0
    %308 = vmatprep.subr.mxu0 0.0
    %309 = vmatpush1.msra.mxu0 0.0
    %310 = vmatprep.subr.mxu0 0.0
    %311 = vmatpush1.msra.mxu0 0.0
    %312 = vmatprep.mubr.f32.mxu0 0.0
    %313 = vmatmul.mubr.f32.gmra.mrb[0].mxu0 %v243
    %v314 = vpop.f32.mrb[0].mxu0
    %v315 = vadd.f32 0.0, %v314
    %v316 = vpop.f32.mrb[0].mxu0
    %317 = vdwg.mxu0
    %v318 = vadd.f32 %v235, %v315
    %v319 = vld [vmem:[%s3] sm:$0xff]
    %v320 = vld [vmem:[#allocation6] sm:$0x3f]
    %vm321 = vcmask 48128
    %v323 = vsel %vm321, %v319, 0
    %vm325 = vcmask 1045504
    %v327 = vsel %vm325, %v320, 0
    %329 = vmatprep.subr.mxu0 0.0
    %330 = vmatpush1.msra.mxu0 %v327
    %331 = vmatprep.subr.mxu0 0.0
    %332 = vmatpush1.msra.mxu0 0.0
    %333 = vmatprep.subr.mxu0 0.0
    %334 = vmatpush1.msra.mxu0 0.0
    %335 = vmatprep.subr.mxu0 0.0
    %336 = vmatpush1.msra.mxu0 0.0
    %337 = vmatprep.subr.mxu0 0.0
    %338 = vmatpush1.msra.mxu0 0.0
    %339 = vmatprep.subr.mxu0 0.0
    %340 = vmatpush1.msra.mxu0 0.0
    %341 = vmatprep.subr.mxu0 0.0
    %342 = vmatpush1.msra.mxu0 0.0
    %343 = vmatprep.subr.mxu0 0.0
    %344 = vmatpush1.msra.mxu0 0.0
    %345 = vmatprep.subr.mxu0 0.0
    %346 = vmatpush1.msra.mxu0 0.0
    %347 = vmatprep.subr.mxu0 0.0
    %348 = vmatpush1.msra.mxu0 0.0
    %349 = vmatprep.subr.mxu0 0.0
    %350 = vmatpush1.msra.mxu0 0.0
    %351 = vmatprep.subr.mxu0 0.0
    %352 = vmatpush1.msra.mxu0 0.0
    %353 = vmatprep.subr.mxu0 0.0
    %354 = vmatpush1.msra.mxu0 0.0
    %355 = vmatprep.subr.mxu0 0.0
    %356 = vmatpush1.msra.mxu0 0.0
    %357 = vmatprep.subr.mxu0 0.0
    %358 = vmatpush1.msra.mxu0 0.0
    %359 = vmatprep.subr.mxu0 0.0
    %360 = vmatpush1.msra.mxu0 0.0
    %361 = vmatprep.subr.mxu0 0.0
    %362 = vmatpush1.msra.mxu0 0.0
    %363 = vmatprep.subr.mxu0 0.0
    %364 = vmatpush1.msra.mxu0 0.0
    %365 = vmatprep.subr.mxu0 0.0
    %366 = vmatpush1.msra.mxu0 0.0
    %367 = vmatprep.subr.mxu0 0.0
    %368 = vmatpush1.msra.mxu0 0.0
    %369 = vmatprep.subr.mxu0 0.0
    %370 = vmatpush1.msra.mxu0 0.0
    %371 = vmatprep.subr.mxu0 0.0
    %372 = vmatpush1.msra.mxu0 0.0
    %373 = vmatprep.subr.mxu0 0.0
    %374 = vmatpush1.msra.mxu0 0.0
    %375 = vmatprep.subr.mxu0 0.0
    %376 = vmatpush1.msra.mxu0 0.0
    %377 = vmatprep.subr.mxu0 0.0
    %378 = vmatpush1.msra.mxu0 0.0
    %379 = vmatprep.subr.mxu0 0.0
    %380 = vmatpush1.msra.mxu0 0.0
    %381 = vmatprep.subr.mxu0 0.0
    %382 = vmatpush1.msra.mxu0 0.0
    %383 = vmatprep.subr.mxu0 0.0
    %384 = vmatpush1.msra.mxu0 0.0
    %385 = vmatprep.subr.mxu0 0.0
    %386 = vmatpush1.msra.mxu0 0.0
    %387 = vmatprep.subr.mxu0 0.0
    %388 = vmatpush1.msra.mxu0 0.0
    %389 = vmatprep.subr.mxu0 0.0
    %390 = vmatpush1.msra.mxu0 0.0
    %391 = vmatprep.subr.mxu0 0.0
    %392 = vmatpush1.msra.mxu0 0.0
    %393 = vmatprep.mubr.f32.mxu0 0.0
    %394 = vmatmul.mubr.f32.gmra.mrb[0].mxu0 %v323
    %v395 = vpop.f32.mrb[0].mxu0
    %v396 = vadd.f32 0.0, %v395
    %v397 = vpop.f32.mrb[0].mxu0
    %398 = vdwg.mxu0
    %v399 = vadd.f32 %v318, %v396
    %v400 = vld [vmem:[#allocation7] sm:$0xff]
    %v401 = vadd.f32 %v399, %v400
    %402 = vst [vmem:[%s9] sm:$0xff] %v401
    // Predicated region
    $region54: #{preprocess_forward.1} parent=1 // pred_check
      _
    $region55: #{preprocess_forward.1} parent=1 // pred_check_branch
      %404 = sbr.rel (0) target = $region57
    $region56: #{preprocess_forward.1} parent=1 // pred_region
      _
    $region57: #{preprocess_forward.1} parent=1 // pred_fallthru
      _
    // Predicated region
    $region58: #{preprocess_forward.1} parent=1 // pred_check
      _
    $region59: #{preprocess_forward.1} parent=1 // pred_check_branch
      %406 = sbr.rel (0) target = $region61
    $region60: #{preprocess_forward.1} parent=1 // pred_region
      _
    $region61: #{preprocess_forward.1} parent=1 // pred_fallthru
      _
    %407 = vsyncpa [#allocation3], 1
    %408 = vsyncpa [#allocation5], 1
    %409 = vsyncpa [#allocation8], 1

</llo_original>
